<compile_context>
chip_gen: v7x
topology: tpu7x:2x2x1
jax: 0.10.0
libtpu: 0.0.40
codegen_flags: <defaults>
</compile_context>

<pallas_src>
import functools

import jax
import jax.numpy as jnp
from jax.experimental import pallas as pl
from jax.experimental.pallas import tpu as pltpu


SLAB_LANES = 128   # lane-dense output width (full vreg lane dim)
DISC_LANE0 = 128   # first lane of the folded disc-hidden block in stage 4


# ------------------------------ Pallas kernel ------------------------------


def _club_kernel(xn_ref,
                 w1, b1,      # encoder || prior-generator, layer 1 (block-diag)
                 w2, b2,      # encoder || prior-generator, layer 2 (block-diag)
                 w3, b3,      # fused z-heads, layer 1 (zero rows for z_prior)
                 w4, b4,      # fused z-heads layer 2  +  folded disc layer 1
                 w5, b5,      # utility discriminator output layer
                 o_ref, *, dim_zz, n_heads, dz_lane):
    f32, bf16 = jnp.float32, jnp.bfloat16

    def linear(a_bf16, w_ref, b_ref):
        # bf16 MXU inputs, f32 accumulation, f32 bias epilogue (v5e-safe).
        return jnp.dot(a_bf16, w_ref[...], preferred_element_type=f32) + b_ref[...]

    def relu(h):
        return jnp.maximum(h, 0.0)

    def sigmoid(h):
        # exp + approx reciprocal -> both on the EUP slot, VALU stays free.
        return pl.reciprocal(1.0 + jnp.exp(-h), approx=True)

    xn = xn_ref[...]                                        # (B, img+noise) bf16

    # Stage 1+2: encoder || prior generator (block-diagonal fusion).
    h1 = relu(linear(xn, w1, b1)).astype(bf16)              # (B, 2H)
    zz = linear(h1, w2, b2)                                 # (B, 2*dim_z) = [z | z_prior]

    # Stage 3: fused z-heads first layer (zero weight rows absorb z_prior lanes,
    # so no lane slice of zz is needed).
    h2 = relu(linear(zz.astype(bf16), w3, b3)).astype(bf16)  # (B, 3H)

    # Stage 4: one matmul -> [u_hat | s_hat | d_z_logit | 0-pad | disc_hidden_preact].
    s4 = linear(h2, w4, b4)                                 # (B, 128 + Hd)
    lane = jax.lax.broadcasted_iota(jnp.int32, s4.shape, 1)
    s4 = jnp.where(lane == dz_lane, sigmoid(s4),
                   jnp.where(lane >= DISC_LANE0, relu(s4), s4))

    # Stage 5: utility-discriminator output (head lanes hit zero weight rows,
    # so the full tile is consumed — no lane slice).
    d_u = sigmoid(linear(s4.astype(bf16), w5, b5))          # (B, 1)

    # Lane-dense 128-wide slab assembled by direct region stores (no concat):
    #   [ z | z_prior | u_hat | s_hat | d_z | d_u | zeros... ]
    o_ref[:, 0:dim_zz] = zz.astype(o_ref.dtype)
    # Columns n_heads..(128 - dim_zz) of s4 are exact zeros (zero weights/bias),
    # so this single store also zero-fills the slab's tail lanes.
    o_ref[:, dim_zz:SLAB_LANES] = s4[:, 0:SLAB_LANES - dim_zz].astype(o_ref.dtype)
    du_col = dim_zz + n_heads
    o_ref[:, du_col:du_col + 1] = d_u.astype(o_ref.dtype)


# ---------------------------- parameter handling ----------------------------


def _init_linear(key, d_in, d_out):
    kw, kb = jax.random.split(key)
    scale = 1.0 / jnp.sqrt(jnp.float32(d_in))
    w = jax.random.uniform(kw, (d_in, d_out), jnp.float32, -scale, scale)
    b = jax.random.uniform(kb, (d_out,), jnp.float32, -scale, scale)
    return w, b


def _init_mlp2(key, d_in, d_hidden, d_out):
    k1, k2 = jax.random.split(key)
    w1, b1 = _init_linear(k1, d_in, d_hidden)
    w2, b2 = _init_linear(k2, d_hidden, d_out)
    return (w1, b1, w2, b2)


def init_club_params(key, dim_z, dim_u, dim_noise, dim_img, dim_s, hidden=128):
    keys = jax.random.split(key, 6)
    return {
        "prior_generator":       _init_mlp2(keys[0], dim_noise, hidden, dim_z),
        "z_discriminator":       _init_mlp2(keys[1], dim_z,     hidden, 1),
        "encoder":               _init_mlp2(keys[2], dim_img,   hidden, dim_z),
        "utility_decoder":       _init_mlp2(keys[3], dim_z,     hidden, dim_u),
        "uncertainty_decoder":   _init_mlp2(keys[4], dim_z,     hidden, dim_s),
        "utility_discriminator": _init_mlp2(keys[5], dim_u,     hidden, 1),
    }


def pack_club_params(params, dims):
    """Pack-time fusions: block-diagonal encoder||prior, fused z-heads with the
    utility-discriminator first layer folded in, zero-padded consumers so the
    kernel never takes a lane-misaligned slice. Weights -> bf16, biases -> f32.
    """
    dim_z, dim_u, dim_s = dims["dim_z"], dims["dim_u"], dims["dim_s"]
    dim_img, dim_noise = dims["dim_img"], dims["dim_noise"]

    we1, be1, we2, be2 = params["encoder"]
    wp1, bp1, wp2, bp2 = params["prior_generator"]
    wu1, bu1, wu2, bu2 = params["utility_decoder"]
    ws1, bs1, ws2, bs2 = params["uncertainty_decoder"]
    wz1, bz1, wz2, bz2 = params["z_discriminator"]
    wd1, bd1, wd2, bd2 = params["utility_discriminator"]

    h_e, h_p = we1.shape[1], wp1.shape[1]
    h_h = wu1.shape[1]
    h_d = wd1.shape[1]
    assert wu1.shape[1] == ws1.shape[1] == wz1.shape[1]
    n_heads = dim_u + dim_s + 1
    assert n_heads <= DISC_LANE0 and h_d <= 256

    # Stage 1: [x | noise] -> block-diag hidden.
    w1 = jnp.zeros((dim_img + dim_noise, h_e + h_p), jnp.float32)
    w1 = w1.at[:dim_img, :h_e].set(we1)
    w1 = w1.at[dim_img:, h_e:].set(wp1)
    b1 = jnp.concatenate([be1, bp1])

    # Stage 2: hidden -> [z | z_prior].
    w2 = jnp.zeros((h_e + h_p, 2 * dim_z), jnp.float32)
    w2 = w2.at[:h_e, :dim_z].set(we2)
    w2 = w2.at[h_e:, dim_z:].set(wp2)
    b2 = jnp.concatenate([be2, bp2])

    # Stage 3: [z | z_prior] -> fused-heads hidden (zero rows for z_prior lanes).
    w3 = jnp.zeros((2 * dim_z, 3 * h_h), jnp.float32)
    w3 = w3.at[:dim_z, 0:h_h].set(wu1)
    w3 = w3.at[:dim_z, h_h:2 * h_h].set(ws1)
    w3 = w3.at[:dim_z, 2 * h_h:].set(wz1)
    b3 = jnp.concatenate([bu1, bs1, bz1])

    # Stage 4: heads-hidden -> [u_hat | s_hat | d_z | 0-pad | disc_hidden_preact].
    # Utility-discriminator layer 1 is folded: w_fold = wu2 @ wd1.
    w4 = jnp.zeros((3 * h_h, DISC_LANE0 + h_d), jnp.float32)
    w4 = w4.at[0:h_h, 0:dim_u].set(wu2)
    w4 = w4.at[h_h:2 * h_h, dim_u:dim_u + dim_s].set(ws2)
    w4 = w4.at[2 * h_h:, dim_u + dim_s:n_heads].set(wz2)
    w4 = w4.at[0:h_h, DISC_LANE0:DISC_LANE0 + h_d].set(wu2 @ wd1)
    b4 = jnp.zeros((DISC_LANE0 + h_d,), jnp.float32)
    b4 = b4.at[0:dim_u].set(bu2)
    b4 = b4.at[dim_u:dim_u + dim_s].set(bs2)
    b4 = b4.at[dim_u + dim_s:n_heads].set(bz2)
    b4 = b4.at[DISC_LANE0:].set(bu2 @ wd1 + bd1)

    # Stage 5: full stage-4 tile -> d_u logit (zero rows for head/pad lanes).
    w5 = jnp.zeros((DISC_LANE0 + h_d, 1), jnp.float32)
    w5 = w5.at[DISC_LANE0:, :].set(wd2)
    b5 = bd2

    def W(a):
        return a.astype(jnp.bfloat16)

    def B(a):
        return a.reshape(1, -1).astype(jnp.float32)

    return (W(w1), B(b1), W(w2), B(b2), W(w3), B(b3),
            W(w4), B(b4), W(w5), B(b5))


# ------------------------------- CLUB forward -------------------------------


def club_forward(packed_params, dims, x, s, noise):
    """Whole CLUB forward in a single fused Pallas kernel."""
    del s  # reference forward is `pass`; s would be a reconstruction target
    dim_z, dim_u, dim_s = dims["dim_z"], dims["dim_u"], dims["dim_s"]
    dim_zz = 2 * dim_z
    n_heads = dim_u + dim_s + 1
    assert dim_zz + n_heads + 1 <= SLAB_LANES
    assert SLAB_LANES - dim_zz <= DISC_LANE0

    B = x.shape[0]
    B_pad = ((B + 15) // 16) * 16          # bf16 sublane-tile multiple

    # Concatenate + cast inputs once in the wrapper; kernel sees bf16 directly.
    xn = jnp.concatenate([x, noise], axis=1).astype(jnp.bfloat16)
    xn_p = jnp.zeros((B_pad, xn.shape[1]), jnp.bfloat16).at[:B].set(xn)

    # Advisory cost estimate for the XLA scheduler.
    weights = packed_params[0::2]
    flops = 2 * B_pad * sum(int(w.shape[0]) * int(w.shape[1]) for w in weights)
    transcendentals = B_pad * (int(packed_params[6].shape[1]) + 1)
    bytes_accessed = (int(xn_p.size) * 2
                      + sum(int(p.size) * int(p.dtype.itemsize) for p in packed_params)
                      + B_pad * SLAB_LANES * 4)

    vmem = pl.BlockSpec(memory_space=pltpu.MemorySpace.VMEM)
    kernel = functools.partial(_club_kernel, dim_zz=dim_zz,
                               n_heads=n_heads, dz_lane=dim_u + dim_s)

    # TODO(synk): for production batch sizes add grid=(B_pad // TILE_B,) with
    # dimension_semantics=("parallel",), constant index_maps on the 10 weight
    # operands, and re-budget TILE_B against v7x's 64 MiB VMEM.
    slab = pl.pallas_call(
        kernel,
        out_shape=jax.ShapeDtypeStruct((B_pad, SLAB_LANES), jnp.float32),
        in_specs=[vmem] * (1 + len(packed_params)),
        out_specs=vmem,
        compiler_params=pltpu.CompilerParams(vmem_limit_bytes=32 * 1024 * 1024),
        cost_estimate=pl.CostEstimate(flops=flops,
                                      transcendentals=transcendentals,
                                      bytes_accessed=bytes_accessed),
    )(xn_p, *packed_params)

    slab = slab[:B]
    z = slab[:, 0:dim_z]
    z_prior = slab[:, dim_z:dim_zz]
    u_hat = slab[:, dim_zz:dim_zz + dim_u]
    s_hat = slab[:, dim_zz + dim_u:dim_zz + dim_u + dim_s]
    d_z = slab[:, dim_zz + dim_u + dim_s:dim_zz + n_heads]
    d_u = slab[:, dim_zz + n_heads:dim_zz + n_heads + 1]
    return z, u_hat, s_hat, d_u, z_prior, d_z


# --------------------------- pure-JAX reference -----------------------------


def _rb(a):
    return a.astype(jnp.bfloat16).astype(jnp.float32)


def _ref_forward(raw, x, noise):
    """Unfused pure-JAX reference mirroring bf16-rounded matmul operands."""
    def mlp(p, a, sig=False):
        w1, b1, w2, b2 = p
        h = jnp.maximum(_rb(a) @ _rb(w1) + b1, 0.0)
        o = _rb(h) @ _rb(w2) + b2
        return jax.nn.sigmoid(o) if sig else o

    z = mlp(raw["encoder"], x)
    u_hat = mlp(raw["utility_decoder"], z)
    s_hat = mlp(raw["uncertainty_decoder"], z)
    d_u = mlp(raw["utility_discriminator"], u_hat, sig=True)
    z_prior = mlp(raw["prior_generator"], noise)
    d_z = mlp(raw["z_discriminator"], z, sig=True)
    return z, u_hat, s_hat, d_u, z_prior, d_z


# ----------------------------------- main ------------------------------------

if __name__ == "__main__":
    batch = 2
    dim_z, dim_u, dim_noise, dim_img, dim_s = 32, 8, 16, 64, 8
    hidden = 128   # full MXU lane width on the K dimension

    key = jax.random.PRNGKey(0)
    k_params, k_x, k_s, k_n = jax.random.split(key, 4)

    raw_params = init_club_params(k_params, dim_z, dim_u, dim_noise, dim_img,
                                  dim_s, hidden=hidden)
    dims = dict(dim_z=dim_z, dim_u=dim_u, dim_s=dim_s,
                dim_noise=dim_noise, dim_img=dim_img)
    packed = pack_club_params(raw_params, dims)

    x = jax.random.normal(k_x, (batch, dim_img), jnp.float32)
    s = jax.random.normal(k_s, (batch, dim_s), jnp.float32)
    noise = jax.random.normal(k_n, (batch, dim_noise), jnp.float32)

    outs = club_forward(packed, dims, x, s, noise)
    outs = jax.block_until_ready(outs)

    z, u_hat, s_hat, d_u, z_prior, d_z = outs
    assert z.shape == (batch, dim_z)
    assert u_hat.shape == (batch, dim_u)
    assert s_hat.shape == (batch, dim_s)
    assert d_u.shape == (batch, 1)
    assert z_prior.shape == (batch, dim_z)
    assert d_z.shape == (batch, 1)
    assert all(bool(jnp.all(jnp.isfinite(o))) for o in outs)

    # Numerical check against a pure-JAX reference (bf16-matched operands).
    refs = _ref_forward(raw_params, x, noise)
    for got, ref in zip(outs, refs):
        assert bool(jnp.allclose(got, ref, atol=2e-2, rtol=2e-2)), (
            "mismatch vs reference")

    print("KERNEL_OK")
</pallas_src>

<mosaic_0001>
module attributes {stable_mosaic.version = 11 : i64} {
  func.func @_club_kernel(%arg0: memref<16x80xbf16, #tpu.memory_space<vmem>>, %arg1: memref<80x256xbf16, #tpu.memory_space<vmem>>, %arg2: memref<1x256xf32, #tpu.memory_space<vmem>>, %arg3: memref<256x64xbf16, #tpu.memory_space<vmem>>, %arg4: memref<1x64xf32, #tpu.memory_space<vmem>>, %arg5: memref<64x384xbf16, #tpu.memory_space<vmem>>, %arg6: memref<1x384xf32, #tpu.memory_space<vmem>>, %arg7: memref<384x256xbf16, #tpu.memory_space<vmem>>, %arg8: memref<1x256xf32, #tpu.memory_space<vmem>>, %arg9: memref<256x1xbf16, #tpu.memory_space<vmem>>, %arg10: memref<1x1xf32, #tpu.memory_space<vmem>>, %arg11: memref<16x128xf32, #tpu.memory_space<vmem>>) attributes {dimension_semantics = [], scalar_prefetch = 0 : i64, scratch_operands = 0 : i64, tpu.core_type = #tpu.core_type<tc>} {
    %c0 = arith.constant 0 : index
    %c0_0 = arith.constant 0 : index
    %0 = vector.load %arg0[%c0, %c0_0] : memref<16x80xbf16, #tpu.memory_space<vmem>>, vector<16x80xbf16>
    %c0_1 = arith.constant 0 : index
    %c0_2 = arith.constant 0 : index
    %1 = vector.load %arg1[%c0_1, %c0_2] : memref<80x256xbf16, #tpu.memory_space<vmem>>, vector<80x256xbf16>
    %cst = arith.constant dense<0.000000e+00> : vector<16x256xf32>
    %2 = tpu.matmul %0, %1, %cst {dimension_numbers = #tpu.dot_dimension_numbers<[1], [0], [0], [1], [0, 0, 1, 1], [], []>} : vector<16x80xbf16>, vector<80x256xbf16>, vector<16x256xf32> -> vector<16x256xf32>
    %c0_3 = arith.constant 0 : index
    %c0_4 = arith.constant 0 : index
    %3 = vector.load %arg2[%c0_3, %c0_4] : memref<1x256xf32, #tpu.memory_space<vmem>>, vector<1x256xf32>
    %4 = vector.broadcast %3 : vector<1x256xf32> to vector<16x256xf32>
    %5 = arith.addf %2, %4 : vector<16x256xf32>
    %cst_5 = arith.constant 0.000000e+00 : f32
    %6 = vector.broadcast %cst_5 : f32 to vector<16x256xf32>
    %7 = arith.maximumf %5, %6 : vector<16x256xf32>
    %8 = arith.truncf %7 : vector<16x256xf32> to vector<16x256xbf16>
    %c0_6 = arith.constant 0 : index
    %c0_7 = arith.constant 0 : index
    %9 = vector.load %arg3[%c0_6, %c0_7] : memref<256x64xbf16, #tpu.memory_space<vmem>>, vector<256x64xbf16>
    %cst_8 = arith.constant dense<0.000000e+00> : vector<16x64xf32>
    %10 = tpu.matmul %8, %9, %cst_8 {dimension_numbers = #tpu.dot_dimension_numbers<[1], [0], [0], [1], [0, 0, 1, 1], [], []>} : vector<16x256xbf16>, vector<256x64xbf16>, vector<16x64xf32> -> vector<16x64xf32>
    %c0_9 = arith.constant 0 : index
    %c0_10 = arith.constant 0 : index
    %11 = vector.load %arg4[%c0_9, %c0_10] : memref<1x64xf32, #tpu.memory_space<vmem>>, vector<1x64xf32>
    %12 = vector.broadcast %11 : vector<1x64xf32> to vector<16x64xf32>
    %13 = arith.addf %10, %12 : vector<16x64xf32>
    %14 = arith.truncf %13 : vector<16x64xf32> to vector<16x64xbf16>
    %c0_11 = arith.constant 0 : index
    %c0_12 = arith.constant 0 : index
    %15 = vector.load %arg5[%c0_11, %c0_12] : memref<64x384xbf16, #tpu.memory_space<vmem>>, vector<64x384xbf16>
    %cst_13 = arith.constant dense<0.000000e+00> : vector<16x384xf32>
    %16 = tpu.matmul %14, %15, %cst_13 {dimension_numbers = #tpu.dot_dimension_numbers<[1], [0], [0], [1], [0, 0, 1, 1], [], []>} : vector<16x64xbf16>, vector<64x384xbf16>, vector<16x384xf32> -> vector<16x384xf32>
    %c0_14 = arith.constant 0 : index
    %c0_15 = arith.constant 0 : index
    %17 = vector.load %arg6[%c0_14, %c0_15] : memref<1x384xf32, #tpu.memory_space<vmem>>, vector<1x384xf32>
    %18 = vector.broadcast %17 : vector<1x384xf32> to vector<16x384xf32>
    %19 = arith.addf %16, %18 : vector<16x384xf32>
    %cst_16 = arith.constant 0.000000e+00 : f32
    %20 = vector.broadcast %cst_16 : f32 to vector<16x384xf32>
    %21 = arith.maximumf %19, %20 : vector<16x384xf32>
    %22 = arith.truncf %21 : vector<16x384xf32> to vector<16x384xbf16>
    %c0_17 = arith.constant 0 : index
    %c0_18 = arith.constant 0 : index
    %23 = vector.load %arg7[%c0_17, %c0_18] : memref<384x256xbf16, #tpu.memory_space<vmem>>, vector<384x256xbf16>
    %cst_19 = arith.constant dense<0.000000e+00> : vector<16x256xf32>
    %24 = tpu.matmul %22, %23, %cst_19 {dimension_numbers = #tpu.dot_dimension_numbers<[1], [0], [0], [1], [0, 0, 1, 1], [], []>} : vector<16x384xbf16>, vector<384x256xbf16>, vector<16x256xf32> -> vector<16x256xf32>
    %c0_20 = arith.constant 0 : index
    %c0_21 = arith.constant 0 : index
    %25 = vector.load %arg8[%c0_20, %c0_21] : memref<1x256xf32, #tpu.memory_space<vmem>>, vector<1x256xf32>
    %26 = vector.broadcast %25 : vector<1x256xf32> to vector<16x256xf32>
    %27 = arith.addf %24, %26 : vector<16x256xf32>
    %28 = tpu.iota {dimensions = array<i32: 1>} : vector<16x256xi32>
    %c16_i32 = arith.constant 16 : i32
    %29 = vector.broadcast %c16_i32 : i32 to vector<16x256xi32>
    %30 = arith.cmpi eq, %28, %29 : vector<16x256xi32>
    %cst_22 = arith.constant 0.000000e+00 : f32
    %31 = vector.broadcast %cst_22 : f32 to vector<16x256xf32>
    %32 = arith.subf %31, %27 : vector<16x256xf32>
    %33 = math.exp %32 : vector<16x256xf32>
    %cst_23 = arith.constant 1.000000e+00 : f32
    %34 = vector.broadcast %cst_23 : f32 to vector<16x256xf32>
    %35 = arith.addf %34, %33 : vector<16x256xf32>
    %36 = tpu.reciprocal %35 {approx = true} : vector<16x256xf32> -> vector<16x256xf32>
    %c128_i32 = arith.constant 128 : i32
    %37 = vector.broadcast %c128_i32 : i32 to vector<16x256xi32>
    %38 = arith.cmpi sge, %28, %37 : vector<16x256xi32>
    %cst_24 = arith.constant 0.000000e+00 : f32
    %39 = vector.broadcast %cst_24 : f32 to vector<16x256xf32>
    %40 = arith.maximumf %27, %39 : vector<16x256xf32>
    %41 = arith.select %38, %40, %27 : vector<16x256xi1>, vector<16x256xf32>
    %42 = arith.select %30, %36, %41 : vector<16x256xi1>, vector<16x256xf32>
    %43 = arith.truncf %42 : vector<16x256xf32> to vector<16x256xbf16>
    %c0_25 = arith.constant 0 : index
    %c0_26 = arith.constant 0 : index
    %44 = vector.load %arg9[%c0_25, %c0_26] : memref<256x1xbf16, #tpu.memory_space<vmem>>, vector<256x1xbf16>
    %cst_27 = arith.constant dense<0.000000e+00> : vector<16x1xf32>
    %45 = tpu.matmul %43, %44, %cst_27 {dimension_numbers = #tpu.dot_dimension_numbers<[1], [0], [0], [1], [0, 0, 1, 1], [], []>} : vector<16x256xbf16>, vector<256x1xbf16>, vector<16x1xf32> -> vector<16x1xf32>
    %c0_28 = arith.constant 0 : index
    %c0_29 = arith.constant 0 : index
    %46 = vector.load %arg10[%c0_28, %c0_29] : memref<1x1xf32, #tpu.memory_space<vmem>>, vector<1x1xf32>
    %47 = vector.broadcast %46 : vector<1x1xf32> to vector<16x1xf32>
    %48 = arith.addf %45, %47 : vector<16x1xf32>
    %cst_30 = arith.constant 0.000000e+00 : f32
    %49 = vector.broadcast %cst_30 : f32 to vector<16x1xf32>
    %50 = arith.subf %49, %48 : vector<16x1xf32>
    %51 = math.exp %50 : vector<16x1xf32>
    %cst_31 = arith.constant 1.000000e+00 : f32
    %52 = vector.broadcast %cst_31 : f32 to vector<16x1xf32>
    %53 = arith.addf %52, %51 : vector<16x1xf32>
    %54 = tpu.reciprocal %53 {approx = true} : vector<16x1xf32> -> vector<16x1xf32>
    %c0_32 = arith.constant 0 : index
    %c0_33 = arith.constant 0 : index
    %55 = vector.load %arg11[%c0_32, %c0_33] : memref<16x128xf32, #tpu.memory_space<vmem>>, vector<16x64xf32>
    tpu.vector_store %arg11[%c0_32, %c0_33], %13 {strides = array<i32>} : memref<16x128xf32, #tpu.memory_space<vmem>>, vector<16x64xf32>,
    %56 = vector.extract_strided_slice %42 {offsets = [0, 0], sizes = [16, 64], strides = [1, 1]} : vector<16x256xf32> to vector<16x64xf32>
    %c0_34 = arith.constant 0 : index
    %c64 = arith.constant 64 : index
    %57 = vector.load %arg11[%c0_34, %c64] : memref<16x128xf32, #tpu.memory_space<vmem>>, vector<16x64xf32>
    tpu.vector_store %arg11[%c0_34, %c64], %56 {strides = array<i32>} : memref<16x128xf32, #tpu.memory_space<vmem>>, vector<16x64xf32>,
    %c0_35 = arith.constant 0 : index
    %c81 = arith.constant 81 : index
    %58 = vector.load %arg11[%c0_35, %c81] : memref<16x128xf32, #tpu.memory_space<vmem>>, vector<16x1xf32>
    tpu.vector_store %arg11[%c0_35, %c81], %54 {strides = array<i32>} : memref<16x128xf32, #tpu.memory_space<vmem>>, vector<16x1xf32>,
    return
  }
}

</mosaic_0001>

<llo_original>
// kernel: tpu_custom_call.1
$region0: #{tpu_custom_call.1}
  #allocation0 [shape = 'u32[]', space=smem, size = 0x4, offset = 0x4, fixed_abs, tag = 'smem constant byte address 0x4 - core index']
  #allocation1 [shape = 'u32[144,128]{1,0:T(1,128)}', space=vmem, size = 0x12000, scoped, tag = 'internal scratch']
  #allocation2 [shape = 'f32[1,1]{1,0:T(1,128)S(1)}', space=vmem, size = 0x200, scoped, tag = 'scoped memory for tpu_custom_call.1']
  %s0 = inlined_call_operand.vmem [shape: bf16[16,80], index: 0, kind: input, shape index: {}]
  %s1 = inlined_call_operand.vmem [shape: bf16[80,256], index: 1, kind: input, shape index: {}]
  %s2 = inlined_call_operand.vmem [shape: f32[1,256], index: 2, kind: input, shape index: {}]
  %s3 = inlined_call_operand.vmem [shape: bf16[256,64], index: 3, kind: input, shape index: {}]
  %s4 = inlined_call_operand.vmem [shape: f32[1,64], index: 4, kind: input, shape index: {}]
  %s5 = inlined_call_operand.vmem [shape: bf16[64,384], index: 5, kind: input, shape index: {}]
  %s6 = inlined_call_operand.vmem [shape: f32[1,384], index: 6, kind: input, shape index: {}]
  %s7 = inlined_call_operand.hbm [shape: bf16[384,256], index: 7, kind: input, shape index: {}]
  %s8 = inlined_call_operand.vmem [shape: f32[1,256], index: 8, kind: input, shape index: {}]
  %s9 = inlined_call_operand.vmem [shape: bf16[256,1], index: 9, kind: input, shape index: {}]
  %s10 = inlined_call_operand.<no memory space> [shape: f32[1,1], index: 10, kind: input, shape index: {}]
  %s11 = inlined_call_operand.hbm [shape: f32[16,128], index: 11, kind: output, shape index: {}]
  %s12 = sld [smem:[#allocation0]]
  $region58: #{tpu_custom_call.1} parent=0
    _
  %s14 = ssub.s32 1, %s12
  %s15 = scalar_select 0, %s14, %s12
  %v16 = vstv %s10
  %17 = vst [vmem:[#allocation2] sm:$0x1] %v16
  $region1: #{tpu_custom_call.1} parent=0
    #allocation3 [shape = 'u8[196608]{0}', space=vmem, size = 0x30000, scoped, tag = 'input window, operand 7, single buffered']
    #allocation4 [shape = 's32[1]{0}', space=sflag, size = 0x4, scoped, tag = 'scoped memory for tpu_custom_call.1']
    #allocation5 [shape = 's32[1]{0}', space=sflag, size = 0x4, scoped, tag = 'scoped memory for tpu_custom_call.1']
    #allocation6 [shape = 'u8[8192]{0}', space=vmem, size = 0x2000, scoped, tag = 'output window, operand 0, single buffered']
    %18 = vsyncpa [#allocation4], 0
    %19 = vsyncpa [#allocation5], 0
    // Predicated region
    $region2: #{tpu_custom_call.1} parent=1 // pred_check
      _
    $region3: #{tpu_custom_call.1} parent=1 // pred_check_branch
      %21 = sbr.rel (0) target = $region5
    $region4: #{tpu_custom_call.1} parent=1 // pred_region
      _
    $region5: #{tpu_custom_call.1} parent=1 // pred_fallthru
      _
    // Predicated region
    $region6: #{tpu_custom_call.1} parent=1 // pred_check
      _
    $region7: #{tpu_custom_call.1} parent=1 // pred_check_branch
      %23 = sbr.rel (0) target = $region9
    $region8: #{tpu_custom_call.1} parent=1 // pred_region
      _
    $region9: #{tpu_custom_call.1} parent=1 // pred_fallthru
      _
    // Predicated region
    $region10: #{tpu_custom_call.1} parent=1 // pred_check
      _
    $region11: #{tpu_custom_call.1} parent=1 // pred_check_branch
      %25 = sbr.rel (0) target = $region13
    $region12: #{tpu_custom_call.1} parent=1 // pred_region
      _
    $region13: #{tpu_custom_call.1} parent=1 // pred_fallthru
      _
    // Predicated region
    $region14: #{tpu_custom_call.1} parent=1 // pred_check
      _
    $region15: #{tpu_custom_call.1} parent=1 // pred_check_branch
      %27 = sbr.rel (0) target = $region17
    $region16: #{tpu_custom_call.1} parent=1 // pred_region
      _
    $region17: #{tpu_custom_call.1} parent=1 // pred_fallthru
      _
    // Predicated region
    $region18: #{tpu_custom_call.1} parent=1 // pred_check
      _
    $region19: #{tpu_custom_call.1} parent=1 // pred_check_branch
      %29 = sbr.rel (0) target = $region21
    $region20: #{tpu_custom_call.1} parent=1 // pred_region
      _
    $region21: #{tpu_custom_call.1} parent=1 // pred_fallthru
      _
    // Predicated region
    $region22: #{tpu_custom_call.1} parent=1 // pred_check
      _
    $region23: #{tpu_custom_call.1} parent=1 // pred_check_branch
      %31 = sbr.rel (0) target = $region25
    $region24: #{tpu_custom_call.1} parent=1 // pred_region
      _
    $region25: #{tpu_custom_call.1} parent=1 // pred_fallthru
      _
    // Predicated region
    $region26: #{tpu_custom_call.1} parent=1 // pred_check
      _
    $region27: #{tpu_custom_call.1} parent=1 // pred_check_branch
      %33 = sbr.rel (0) target = $region29
    $region28: #{tpu_custom_call.1} parent=1 // pred_region
      _
    $region29: #{tpu_custom_call.1} parent=1 // pred_fallthru
      _
    // Predicated region
    $region30: #{tpu_custom_call.1} parent=1 // pred_check
      _
    $region31: #{tpu_custom_call.1} parent=1 // pred_check_branch
      %35 = sbr.rel (0) target = $region33
    $region32: #{tpu_custom_call.1} parent=1 // pred_region
      %s37 = ssub.s32 6144, 6144
      %38 = vsyncadd [#allocation4], %s37
      %s39 = sshll.u32 [#allocation3], 4
      %s40 = int_to_ptr.vmem [resolvable:$true] %s39
      %45 = dma.hbm_to_vmem [thread:$0]  %s7, 6144, %s40, [#allocation4], 128, 128, 8
    $region33: #{tpu_custom_call.1} parent=1 // pred_fallthru
      _
    // Predicated region
    $region34: #{tpu_custom_call.1} parent=1 // pred_check
      _
    $region35: #{tpu_custom_call.1} parent=1 // pred_check_branch
      %47 = sbr.rel (0) target = $region37
    $region36: #{tpu_custom_call.1} parent=1 // pred_region
      _
    $region37: #{tpu_custom_call.1} parent=1 // pred_fallthru
      _
    // Predicated region
    $region38: #{tpu_custom_call.1} parent=1 // pred_check
      _
    $region39: #{tpu_custom_call.1} parent=1 // pred_check_branch
      %49 = sbr.rel (0) target = $region41
    $region40: #{tpu_custom_call.1} parent=1 // pred_region
      _
    $region41: #{tpu_custom_call.1} parent=1 // pred_fallthru
      _
    // Predicated region
    $region42: #{tpu_custom_call.1} parent=1 // pred_check
      _
    $region43: #{tpu_custom_call.1} parent=1 // pred_check_branch
      %51 = sbr.rel (0) target = $region45
    $region44: #{tpu_custom_call.1} parent=1 // pred_region
      _
    $region45: #{tpu_custom_call.1} parent=1 // pred_fallthru
      _
    // Predicated region
    $region46: #{tpu_custom_call.1} parent=1 // pred_check
      _
    $region47: #{tpu_custom_call.1} parent=1 // pred_check_branch
      %53 = sbr.rel (0) target = $region49
    $region48: #{tpu_custom_call.1} parent=1 // pred_region
      %54 = dma.done [#allocation4], 6144
    $region49: #{tpu_custom_call.1} parent=1 // pred_fallthru
      _
    %v56 = vld [vmem:[%s0] sm:$0xf]
    %v57 = vld [vmem:[%s0 + $0x4] sm:$0xf]
    %v58 = vld [vmem:[%s1] sm:$0xff]
    %v59 = vld [vmem:[%s1 + $0x8] sm:$0xff]
    %v60 = vld [vmem:[%s1 + $0x10] sm:$0xff]
    %v61 = vld [vmem:[%s1 + $0x18] sm:$0xff]
    %v62 = vld [vmem:[%s1 + $0x20] sm:$0xff]
    %v63 = vld [vmem:[%s1 + $0x28] sm:$0xff]
    %v64 = vld [vmem:[%s1 + $0x30] sm:$0xff]
    %v65 = vld [vmem:[%s1 + $0x38] sm:$0xff]
    %v66 = vld [vmem:[%s1 + $0x40] sm:$0xff]
    %v67 = vld [vmem:[%s1 + $0x48] sm:$0xff]
    %v68 = vld [vmem:[%s2] sm:$0x3]
    %v70 = vlaneseq
    %v71 = vshrl.u32 %v70, 7
    %v72 = vsub.s32 0, %v71
    %v73 = vrot.slane %v68, %v72
    %v74 = vlaneseq
    %v75 = vshrl.u32 %v74, 7
    %v76 = vsub.s32 1, %v75
    %v77 = vrot.slane %v68, %v76
    %v82 = vunpack.c.l.b16 %v56
    %v83 = vunpack.c.l.b16 %v57
    %v84 = vpack.c.b16 %v83, %v82
    %v95 = vunpack.c.l.b16 %v58
    %v96 = vunpack.c.h.b16 %v58
    %v97 = vunpack.c.l.b16 %v59
    %v98 = vunpack.c.h.b16 %v59
    %v99 = vunpack.c.l.b16 %v60
    %v100 = vunpack.c.h.b16 %v60
    %v101 = vunpack.c.l.b16 %v61
    %v102 = vunpack.c.h.b16 %v61
    %v103 = vunpack.c.l.b16 %v62
    %v104 = vunpack.c.h.b16 %v62
    %v105 = vunpack.c.l.b16 %v63
    %v106 = vunpack.c.h.b16 %v63
    %v107 = vunpack.c.l.b16 %v64
    %v108 = vunpack.c.h.b16 %v64
    %v109 = vunpack.c.l.b16 %v65
    %v110 = vunpack.c.h.b16 %v65
    %v111 = vunpack.c.l.b16 %v66
    %v112 = vunpack.c.h.b16 %v66
    %v113 = vunpack.c.l.b16 %v67
    %v114 = vunpack.c.h.b16 %v67
    %v115 = vpack.c.b16 %v97, %v95
    %v116 = vpack.c.b16 %v98, %v96
    %v117 = vpack.c.b16 %v101, %v99
    %v118 = vpack.c.b16 %v102, %v100
    %v119 = vpack.c.b16 %v105, %v103
    %v120 = vpack.c.b16 %v106, %v104
    %v121 = vpack.c.b16 %v109, %v107
    %v122 = vpack.c.b16 %v110, %v108
    %v123 = vpack.c.b16 %v113, %v111
    %v124 = vpack.c.b16 %v114, %v112
    %vm135 = vcmask 654336
    %v137 = vsel %vm135, %v84, 0
    %139 = vmatprep.subr.bf16.mxu0 %v116
    %140 = vmatpush1.bf16.msra.mxu0 %v115
    %141 = vmatprep.subr.bf16.mxu0 %v118
    %142 = vmatpush1.bf16.msra.mxu0 %v117
    %143 = vmatprep.subr.bf16.mxu0 %v120
    %144 = vmatpush1.bf16.msra.mxu0 %v119
    %145 = vmatprep.subr.bf16.mxu0 %v122
    %146 = vmatpush1.bf16.msra.mxu0 %v121
    %147 = vmatprep.subr.bf16.mxu0 %v124
    %148 = vmatpush1.bf16.msra.mxu0 %v123
    %149 = vmatprep.subr.bf16.mxu0 0
    %150 = vmatpush1.bf16.msra.mxu0 0
    %151 = vmatprep.subr.bf16.mxu0 0
    %152 = vmatpush1.bf16.msra.mxu0 0
    %153 = vmatprep.subr.bf16.mxu0 0
    %154 = vmatpush1.bf16.msra.mxu0 0
    %155 = vmatprep.subr.bf16.mxu0 0
    %156 = vmatpush1.bf16.msra.mxu0 0
    %157 = vmatprep.subr.bf16.mxu0 0
    %158 = vmatpush1.bf16.msra.mxu0 0
    %159 = vmatprep.subr.bf16.mxu0 0
    %160 = vmatpush1.bf16.msra.mxu0 0
    %161 = vmatprep.subr.bf16.mxu0 0
    %162 = vmatpush1.bf16.msra.mxu0 0
    %163 = vmatprep.subr.bf16.mxu0 0
    %164 = vmatpush1.bf16.msra.mxu0 0
    %165 = vmatprep.subr.bf16.mxu0 0
    %166 = vmatpush1.bf16.msra.mxu0 0
    %167 = vmatprep.subr.bf16.mxu0 0
    %168 = vmatpush1.bf16.msra.mxu0 0
    %169 = vmatprep.subr.bf16.mxu0 0
    %170 = vmatpush1.bf16.msra.mxu0 0
    %171 = vmatprep.mubr.bf16.mxu0 0
    %172 = vmatmul.mubr.bf16.gmra.mrb[0].mxu0 %v137
    %v173 = vpop.f32.mrb[0].mxu0
    %v174 = vadd.f32 %v73, %v173
    %v175 = vpop.f32.mrb[0].mxu0
    %v176 = vadd.f32 %v77, %v175
    %v177 = vpop.f32.mrb[0].mxu0
    %v178 = vadd.f32 %v73, %v177
    %v179 = vpop.f32.mrb[0].mxu0
    %v180 = vadd.f32 %v77, %v179
    %181 = vdwg.mxu0
    %v182 = vmax.f32 %v174, 0.0
    %v183 = vmax.f32 %v176, 0.0
    %v184 = vmax.f32 %v178, 0.0
    %v185 = vmax.f32 %v180, 0.0
    %v186 = vpack.c.bf16 %v184, %v182
    %v187 = vpack.c.bf16 %v185, %v183
    %v188 = vld [vmem:[%s3] sm:$0xf]
    %v189 = vld [vmem:[%s3 + $0x4] sm:$0xf]
    %v190 = vld [vmem:[%s3 + $0x8] sm:$0xf]
    %v191 = vld [vmem:[%s3 + $0xc] sm:$0xf]
    %v192 = vld [vmem:[%s3 + $0x10] sm:$0xf]
    %v193 = vld [vmem:[%s3 + $0x14] sm:$0xf]
    %v194 = vld [vmem:[%s3 + $0x18] sm:$0xf]
    %v195 = vld [vmem:[%s3 + $0x1c] sm:$0xf]
    %v196 = vld [vmem:[%s3 + $0x20] sm:$0xf]
    %v197 = vld [vmem:[%s3 + $0x24] sm:$0xf]
    %v198 = vld [vmem:[%s3 + $0x28] sm:$0xf]
    %v199 = vld [vmem:[%s3 + $0x2c] sm:$0xf]
    %v200 = vld [vmem:[%s3 + $0x30] sm:$0xf]
    %v201 = vld [vmem:[%s3 + $0x34] sm:$0xf]
    %v202 = vld [vmem:[%s3 + $0x38] sm:$0xf]
    %v203 = vld [vmem:[%s3 + $0x3c] sm:$0xf]
    %v204 = vld [vmem:[%s3 + $0x40] sm:$0xf]
    %v205 = vld [vmem:[%s3 + $0x44] sm:$0xf]
    %v206 = vld [vmem:[%s3 + $0x48] sm:$0xf]
    %v207 = vld [vmem:[%s3 + $0x4c] sm:$0xf]
    %v208 = vld [vmem:[%s3 + $0x50] sm:$0xf]
    %v209 = vld [vmem:[%s3 + $0x54] sm:$0xf]
    %v210 = vld [vmem:[%s3 + $0x58] sm:$0xf]
    %v211 = vld [vmem:[%s3 + $0x5c] sm:$0xf]
    %v212 = vld [vmem:[%s3 + $0x60] sm:$0xf]
    %v213 = vld [vmem:[%s3 + $0x64] sm:$0xf]
    %v214 = vld [vmem:[%s3 + $0x68] sm:$0xf]
    %v215 = vld [vmem:[%s3 + $0x6c] sm:$0xf]
    %v216 = vld [vmem:[%s3 + $0x70] sm:$0xf]
    %v217 = vld [vmem:[%s3 + $0x74] sm:$0xf]
    %v218 = vld [vmem:[%s3 + $0x78] sm:$0xf]
    %v219 = vld [vmem:[%s3 + $0x7c] sm:$0xf]
    %v220 = vld [vmem:[%s4] sm:$0x1]
    %v222 = vlaneseq
    %v223 = vshrl.u32 %v222, 7
    %v224 = vsub.s32 0, %v223
    %v225 = vrot.slane %v220, %v224
    %v259 = vunpack.c.l.b16 %v188
    %v260 = vunpack.c.l.b16 %v189
    %v261 = vunpack.c.l.b16 %v190
    %v262 = vunpack.c.l.b16 %v191
    %v263 = vunpack.c.l.b16 %v192
    %v264 = vunpack.c.l.b16 %v193
    %v265 = vunpack.c.l.b16 %v194
    %v266 = vunpack.c.l.b16 %v195
    %v267 = vunpack.c.l.b16 %v196
    %v268 = vunpack.c.l.b16 %v197
    %v269 = vunpack.c.l.b16 %v198
    %v270 = vunpack.c.l.b16 %v199
    %v271 = vunpack.c.l.b16 %v200
    %v272 = vunpack.c.l.b16 %v201
    %v273 = vunpack.c.l.b16 %v202
    %v274 = vunpack.c.l.b16 %v203
    %v275 = vunpack.c.l.b16 %v204
    %v276 = vunpack.c.l.b16 %v205
    %v277 = vunpack.c.l.b16 %v206
    %v278 = vunpack.c.l.b16 %v207
    %v279 = vunpack.c.l.b16 %v208
    %v280 = vunpack.c.l.b16 %v209
    %v281 = vunpack.c.l.b16 %v210
    %v282 = vunpack.c.l.b16 %v211
    %v283 = vunpack.c.l.b16 %v212
    %v284 = vunpack.c.l.b16 %v213
    %v285 = vunpack.c.l.b16 %v214
    %v286 = vunpack.c.l.b16 %v215
    %v287 = vunpack.c.l.b16 %v216
    %v288 = vunpack.c.l.b16 %v217
    %v289 = vunpack.c.l.b16 %v218
    %v290 = vunpack.c.l.b16 %v219
    %v291 = vpack.c.b16 %v260, %v259
    %v292 = vpack.c.b16 %v262, %v261
    %v293 = vpack.c.b16 %v264, %v263
    %v294 = vpack.c.b16 %v266, %v265
    %v295 = vpack.c.b16 %v268, %v267
    %v296 = vpack.c.b16 %v270, %v269
    %v297 = vpack.c.b16 %v272, %v271
    %v298 = vpack.c.b16 %v274, %v273
    %v299 = vpack.c.b16 %v276, %v275
    %v300 = vpack.c.b16 %v278, %v277
    %v301 = vpack.c.b16 %v280, %v279
    %v302 = vpack.c.b16 %v282, %v281
    %v303 = vpack.c.b16 %v284, %v283
    %v304 = vpack.c.b16 %v286, %v285
    %v305 = vpack.c.b16 %v288, %v287
    %v306 = vpack.c.b16 %v290, %v289
    %323 = vmatprep.subr.bf16.mxu0 0
    %324 = vmatpush1.bf16.msra.mxu0 %v291
    %325 = vmatprep.subr.bf16.mxu0 0
    %326 = vmatpush1.bf16.msra.mxu0 %v292
    %327 = vmatprep.subr.bf16.mxu0 0
    %328 = vmatpush1.bf16.msra.mxu0 %v293
    %329 = vmatprep.subr.bf16.mxu0 0
    %330 = vmatpush1.bf16.msra.mxu0 %v294
    %331 = vmatprep.subr.bf16.mxu0 0
    %332 = vmatpush1.bf16.msra.mxu0 %v295
    %333 = vmatprep.subr.bf16.mxu0 0
    %334 = vmatpush1.bf16.msra.mxu0 %v296
    %335 = vmatprep.subr.bf16.mxu0 0
    %336 = vmatpush1.bf16.msra.mxu0 %v297
    %337 = vmatprep.subr.bf16.mxu0 0
    %338 = vmatpush1.bf16.msra.mxu0 %v298
    %339 = vmatprep.subr.bf16.mxu0 0
    %340 = vmatpush1.bf16.msra.mxu0 %v299
    %341 = vmatprep.subr.bf16.mxu0 0
    %342 = vmatpush1.bf16.msra.mxu0 %v300
    %343 = vmatprep.subr.bf16.mxu0 0
    %344 = vmatpush1.bf16.msra.mxu0 %v301
    %345 = vmatprep.subr.bf16.mxu0 0
    %346 = vmatpush1.bf16.msra.mxu0 %v302
    %347 = vmatprep.subr.bf16.mxu0 0
    %348 = vmatpush1.bf16.msra.mxu0 %v303
    %349 = vmatprep.subr.bf16.mxu0 0
    %350 = vmatpush1.bf16.msra.mxu0 %v304
    %351 = vmatprep.subr.bf16.mxu0 0
    %352 = vmatpush1.bf16.msra.mxu0 %v305
    %353 = vmatprep.subr.bf16.mxu0 0
    %354 = vmatpush1.bf16.msra.mxu0 %v306
    %355 = vmatprep.mubr.bf16.mxu0 %v187
    %356 = vmatmul.mubr.bf16.gmra.mrb[0].mxu0 %v186
    %v357 = vpop.f32.mrb[0].mxu0
    %v358 = vadd.f32 %v225, %v357
    %v359 = vpop.f32.mrb[0].mxu0
    %v360 = vpop.f32.mrb[0].mxu0
    %v361 = vadd.f32 %v225, %v360
    %v362 = vpop.f32.mrb[0].mxu0
    %363 = vdwg.mxu0
    %v364 = vpack.c.bf16 %v361, %v358
    %v365 = vld [vmem:[%s5] sm:$0xff]
    %v366 = vld [vmem:[%s5 + $0x8] sm:$0xf]
    %v367 = vld [vmem:[%s5 + $0xc] sm:$0xff]
    %v368 = vld [vmem:[%s5 + $0x14] sm:$0xf]
    %v369 = vld [vmem:[%s5 + $0x18] sm:$0xff]
    %v370 = vld [vmem:[%s5 + $0x20] sm:$0xf]
    %v371 = vld [vmem:[%s5 + $0x24] sm:$0xff]
    %v372 = vld [vmem:[%s5 + $0x2c] sm:$0xf]
    %v373 = vld [vmem:[%s5 + $0x30] sm:$0xff]
    %v374 = vld [vmem:[%s5 + $0x38] sm:$0xf]
    %v375 = vld [vmem:[%s5 + $0x3c] sm:$0xff]
    %v376 = vld [vmem:[%s5 + $0x44] sm:$0xf]
    %v377 = vld [vmem:[%s5 + $0x48] sm:$0xff]
    %v378 = vld [vmem:[%s5 + $0x50] sm:$0xf]
    %v379 = vld [vmem:[%s5 + $0x54] sm:$0xff]
    %v380 = vld [vmem:[%s5 + $0x5c] sm:$0xf]
    %v381 = vld [vmem:[%s6] sm:$0x7]
    %v383 = vlaneseq
    %v384 = vshrl.u32 %v383, 7
    %v385 = vsub.s32 0, %v384
    %v386 = vrot.slane %v381, %v385
    %v387 = vlaneseq
    %v388 = vshrl.u32 %v387, 7
    %v389 = vsub.s32 1, %v388
    %v390 = vrot.slane %v381, %v389
    %v391 = vlaneseq
    %v392 = vshrl.u32 %v391, 7
    %v393 = vsub.s32 2, %v392
    %v394 = vrot.slane %v381, %v393
    %v414 = vunpack.c.l.b16 %v365
    %v415 = vunpack.c.h.b16 %v365
    %v416 = vunpack.c.l.b16 %v366
    %v417 = vunpack.c.l.b16 %v367
    %v418 = vunpack.c.h.b16 %v367
    %v419 = vunpack.c.l.b16 %v368
    %v420 = vunpack.c.l.b16 %v369
    %v421 = vunpack.c.h.b16 %v369
    %v422 = vunpack.c.l.b16 %v370
    %v423 = vunpack.c.l.b16 %v371
    %v424 = vunpack.c.h.b16 %v371
    %v425 = vunpack.c.l.b16 %v372
    %v426 = vunpack.c.l.b16 %v373
    %v427 = vunpack.c.h.b16 %v373
    %v428 = vunpack.c.l.b16 %v374
    %v429 = vunpack.c.l.b16 %v375
    %v430 = vunpack.c.h.b16 %v375
    %v431 = vunpack.c.l.b16 %v376
    %v432 = vunpack.c.l.b16 %v377
    %v433 = vunpack.c.h.b16 %v377
    %v434 = vunpack.c.l.b16 %v378
    %v435 = vunpack.c.l.b16 %v379
    %v436 = vunpack.c.h.b16 %v379
    %v437 = vunpack.c.l.b16 %v380
    %v438 = vpack.c.b16 %v417, %v414
    %v439 = vpack.c.b16 %v418, %v415
    %v440 = vpack.c.b16 %v419, %v416
    %v441 = vpack.c.b16 %v423, %v420
    %v442 = vpack.c.b16 %v424, %v421
    %v443 = vpack.c.b16 %v425, %v422
    %v444 = vpack.c.b16 %v429, %v426
    %v445 = vpack.c.b16 %v430, %v427
    %v446 = vpack.c.b16 %v431, %v428
    %v447 = vpack.c.b16 %v435, %v432
    %v448 = vpack.c.b16 %v436, %v433
    %v449 = vpack.c.b16 %v437, %v434
    %vm462 = vcmask 523264
    %v464 = vsel %vm462, %v364, 0
    %466 = vmatprep.subr.bf16.mxu0 %v439
    %467 = vmatpush1.bf16.msra.mxu0 %v438
    %468 = vmatprep.subr.bf16.mxu0 %v442
    %469 = vmatpush1.bf16.msra.mxu0 %v441
    %470 = vmatprep.subr.bf16.mxu0 %v445
    %471 = vmatpush1.bf16.msra.mxu0 %v444
    %472 = vmatprep.subr.bf16.mxu0 %v448
    %473 = vmatpush1.bf16.msra.mxu0 %v447
    %474 = vmatprep.subr.bf16.mxu0 0
    %475 = vmatpush1.bf16.msra.mxu0 0
    %476 = vmatprep.subr.bf16.mxu0 0
    %477 = vmatpush1.bf16.msra.mxu0 0
    %478 = vmatprep.subr.bf16.mxu0 0
    %479 = vmatpush1.bf16.msra.mxu0 0
    %480 = vmatprep.subr.bf16.mxu0 0
    %481 = vmatpush1.bf16.msra.mxu0 0
    %482 = vmatprep.subr.bf16.mxu0 0
    %483 = vmatpush1.bf16.msra.mxu0 0
    %484 = vmatprep.subr.bf16.mxu0 0
    %485 = vmatpush1.bf16.msra.mxu0 0
    %486 = vmatprep.subr.bf16.mxu0 0
    %487 = vmatpush1.bf16.msra.mxu0 0
    %488 = vmatprep.subr.bf16.mxu0 0
    %489 = vmatpush1.bf16.msra.mxu0 0
    %490 = vmatprep.subr.bf16.mxu0 0
    %491 = vmatpush1.bf16.msra.mxu0 0
    %492 = vmatprep.subr.bf16.mxu0 0
    %493 = vmatpush1.bf16.msra.mxu0 0
    %494 = vmatprep.subr.bf16.mxu0 0
    %495 = vmatpush1.bf16.msra.mxu0 0
    %496 = vmatprep.subr.bf16.mxu0 0
    %497 = vmatpush1.bf16.msra.mxu0 0
    %498 = vmatprep.mubr.bf16.mxu0 0
    %499 = vmatmul.mubr.bf16.gmra.mrb[0].mxu0 %v464
    %v500 = vpop.f32.mrb[0].mxu0
    %v501 = vadd.f32 %v386, %v500
    %v502 = vpop.f32.mrb[0].mxu0
    %v503 = vadd.f32 %v390, %v502
    %v504 = vpop.f32.mrb[0].mxu0
    %v505 = vadd.f32 %v386, %v504
    %v506 = vpop.f32.mrb[0].mxu0
    %v507 = vadd.f32 %v390, %v506
    %508 = vdwg.mxu0
    %509 = vmatprep.subr.bf16.mxu0 0
    %510 = vmatpush1.bf16.msra.mxu0 %v440
    %511 = vmatprep.subr.bf16.mxu0 0
    %512 = vmatpush1.bf16.msra.mxu0 %v443
    %513 = vmatprep.subr.bf16.mxu0 0
    %514 = vmatpush1.bf16.msra.mxu0 %v446
    %515 = vmatprep.subr.bf16.mxu0 0
    %516 = vmatpush1.bf16.msra.mxu0 %v449
    %517 = vmatprep.subr.bf16.mxu0 0
    %518 = vmatpush1.bf16.msra.mxu0 0
    %519 = vmatprep.subr.bf16.mxu0 0
    %520 = vmatpush1.bf16.msra.mxu0 0
    %521 = vmatprep.subr.bf16.mxu0 0
    %522 = vmatpush1.bf16.msra.mxu0 0
    %523 = vmatprep.subr.bf16.mxu0 0
    %524 = vmatpush1.bf16.msra.mxu0 0
    %525 = vmatprep.subr.bf16.mxu0 0
    %526 = vmatpush1.bf16.msra.mxu0 0
    %527 = vmatprep.subr.bf16.mxu0 0
    %528 = vmatpush1.bf16.msra.mxu0 0
    %529 = vmatprep.subr.bf16.mxu0 0
    %530 = vmatpush1.bf16.msra.mxu0 0
    %531 = vmatprep.subr.bf16.mxu0 0
    %532 = vmatpush1.bf16.msra.mxu0 0
    %533 = vmatprep.subr.bf16.mxu0 0
    %534 = vmatpush1.bf16.msra.mxu0 0
    %535 = vmatprep.subr.bf16.mxu0 0
    %536 = vmatpush1.bf16.msra.mxu0 0
    %537 = vmatprep.subr.bf16.mxu0 0
    %538 = vmatpush1.bf16.msra.mxu0 0
    %539 = vmatprep.subr.bf16.mxu0 0
    %540 = vmatpush1.bf16.msra.mxu0 0
    %541 = vmatprep.mubr.bf16.mxu0 0
    %542 = vmatmul.mubr.bf16.gmra.mrb[0].mxu0 %v464
    %v543 = vpop.f32.mrb[0].mxu0
    %v544 = vadd.f32 %v394, %v543
    %v545 = vpop.f32.mrb[0].mxu0
    %v546 = vpop.f32.mrb[0].mxu0
    %v547 = vadd.f32 %v394, %v546
    %v548 = vpop.f32.mrb[0].mxu0
    %549 = vdwg.mxu0
    %v550 = vmax.f32 %v501, 0.0
    %v551 = vmax.f32 %v503, 0.0
    %v552 = vmax.f32 %v544, 0.0
    %v553 = vmax.f32 %v505, 0.0
    %v554 = vmax.f32 %v507, 0.0
    %v555 = vmax.f32 %v547, 0.0
    %v556 = vpack.c.bf16 %v553, %v550
    %v557 = vpack.c.bf16 %v554, %v551
    %v558 = vpack.c.bf16 %v555, %v552
    %v559 = vld [vmem:[#allocation3] sm:$0xff]
    %v560 = vld [vmem:[#allocation3 + $0x8] sm:$0xff]
    %v561 = vld [vmem:[#allocation3 + $0x10] sm:$0xff]
    %v562 = vld [vmem:[#allocation3 + $0x18] sm:$0xff]
    %v563 = vld [vmem:[#allocation3 + $0x20] sm:$0xff]
    %v564 = vld [vmem:[#allocation3 + $0x28] sm:$0xff]
    %v565 = vld [vmem:[#allocation3 + $0x30] sm:$0xff]
    %v566 = vld [vmem:[#allocation3 + $0x38] sm:$0xff]
    %v567 = vld [vmem:[#allocation3 + $0x40] sm:$0xff]
    %v568 = vld [vmem:[#allocation3 + $0x48] sm:$0xff]
    %v569 = vld [vmem:[#allocation3 + $0x50] sm:$0xff]
    %v570 = vld [vmem:[#allocation3 + $0x58] sm:$0xff]
    %v571 = vld [vmem:[#allocation3 + $0x60] sm:$0xff]
    %v572 = vld [vmem:[#allocation3 + $0x68] sm:$0xff]
    %v573 = vld [vmem:[#allocation3 + $0x70] sm:$0xff]
    %v574 = vld [vmem:[#allocation3 + $0x78] sm:$0xff]
    %v575 = vld [vmem:[#allocation3 + $0x80] sm:$0xff]
    %v576 = vld [vmem:[#allocation3 + $0x88] sm:$0xff]
    %v577 = vld [vmem:[#allocation3 + $0x90] sm:$0xff]
    %v578 = vld [vmem:[#allocation3 + $0x98] sm:$0xff]
    %v579 = vld [vmem:[#allocation3 + $0xa0] sm:$0xff]
    %v580 = vld [vmem:[#allocation3 + $0xa8] sm:$0xff]
    %v581 = vld [vmem:[#allocation3 + $0xb0] sm:$0xff]
    %v582 = vld [vmem:[#allocation3 + $0xb8] sm:$0xff]
    %v583 = vld [vmem:[#allocation3 + $0xc0] sm:$0xff]
    %v584 = vld [vmem:[#allocation3 + $0xc8] sm:$0xff]
    %v585 = vld [vmem:[#allocation3 + $0xd0] sm:$0xff]
    %v586 = vld [vmem:[#allocation3 + $0xd8] sm:$0xff]
    %v587 = vld [vmem:[#allocation3 + $0xe0] sm:$0xff]
    %v588 = vld [vmem:[#allocation3 + $0xe8] sm:$0xff]
    %v589 = vld [vmem:[#allocation3 + $0xf0] sm:$0xff]
    %v590 = vld [vmem:[#allocation3 + $0xf8] sm:$0xff]
    %v591 = vld [vmem:[#allocation3 + $0x100] sm:$0xff]
    %v592 = vld [vmem:[#allocation3 + $0x108] sm:$0xff]
    %v593 = vld [vmem:[#allocation3 + $0x110] sm:$0xff]
    %v594 = vld [vmem:[#allocation3 + $0x118] sm:$0xff]
    %v595 = vld [vmem:[#allocation3 + $0x120] sm:$0xff]
    %v596 = vld [vmem:[#allocation3 + $0x128] sm:$0xff]
    %v597 = vld [vmem:[#allocation3 + $0x130] sm:$0xff]
    %v598 = vld [vmem:[#allocation3 + $0x138] sm:$0xff]
    %v599 = vld [vmem:[#allocation3 + $0x140] sm:$0xff]
    %v600 = vld [vmem:[#allocation3 + $0x148] sm:$0xff]
    %v601 = vld [vmem:[#allocation3 + $0x150] sm:$0xff]
    %v602 = vld [vmem:[#allocation3 + $0x158] sm:$0xff]
    %v603 = vld [vmem:[#allocation3 + $0x160] sm:$0xff]
    %v604 = vld [vmem:[#allocation3 + $0x168] sm:$0xff]
    %v605 = vld [vmem:[#allocation3 + $0x170] sm:$0xff]
    %v606 = vld [vmem:[#allocation3 + $0x178] sm:$0xff]
    %v607 = vld [vmem:[%s8] sm:$0x3]
    %v609 = vlaneseq
    %v610 = vshrl.u32 %v609, 7
    %v611 = vsub.s32 0, %v610
    %v612 = vrot.slane %v607, %v611
    %v613 = vlaneseq
    %v614 = vshrl.u32 %v613, 7
    %v615 = vsub.s32 1, %v614
    %v616 = vrot.slane %v607, %v615
    %v667 = vunpack.c.l.b16 %v559
    %v668 = vunpack.c.h.b16 %v559
    %v669 = vunpack.c.l.b16 %v560
    %v670 = vunpack.c.h.b16 %v560
    %v671 = vunpack.c.l.b16 %v561
    %v672 = vunpack.c.h.b16 %v561
    %v673 = vunpack.c.l.b16 %v562
    %v674 = vunpack.c.h.b16 %v562
    %v675 = vunpack.c.l.b16 %v563
    %v676 = vunpack.c.h.b16 %v563
    %v677 = vunpack.c.l.b16 %v564
    %v678 = vunpack.c.h.b16 %v564
    %v679 = vunpack.c.l.b16 %v565
    %v680 = vunpack.c.h.b16 %v565
    %v681 = vunpack.c.l.b16 %v566
    %v682 = vunpack.c.h.b16 %v566
    %v683 = vunpack.c.l.b16 %v567
    %v684 = vunpack.c.h.b16 %v567
    %v685 = vunpack.c.l.b16 %v568
    %v686 = vunpack.c.h.b16 %v568
    %v687 = vunpack.c.l.b16 %v569
    %v688 = vunpack.c.h.b16 %v569
    %v689 = vunpack.c.l.b16 %v570
    %v690 = vunpack.c.h.b16 %v570
    %v691 = vunpack.c.l.b16 %v571
    %v692 = vunpack.c.h.b16 %v571
    %v693 = vunpack.c.l.b16 %v572
    %v694 = vunpack.c.h.b16 %v572
    %v695 = vunpack.c.l.b16 %v573
    %v696 = vunpack.c.h.b16 %v573
    %v697 = vunpack.c.l.b16 %v574
    %v698 = vunpack.c.h.b16 %v574
    %v699 = vunpack.c.l.b16 %v575
    %v700 = vunpack.c.h.b16 %v575
    %v701 = vunpack.c.l.b16 %v576
    %v702 = vunpack.c.h.b16 %v576
    %v703 = vunpack.c.l.b16 %v577
    %v704 = vunpack.c.h.b16 %v577
    %v705 = vunpack.c.l.b16 %v578
    %v706 = vunpack.c.h.b16 %v578
    %v707 = vunpack.c.l.b16 %v579
    %v708 = vunpack.c.h.b16 %v579
    %v709 = vunpack.c.l.b16 %v580
    %v710 = vunpack.c.h.b16 %v580
    %v711 = vunpack.c.l.b16 %v581
    %v712 = vunpack.c.h.b16 %v581
    %v713 = vunpack.c.l.b16 %v582
    %v714 = vunpack.c.h.b16 %v582
    %v715 = vunpack.c.l.b16 %v583
    %v716 = vunpack.c.h.b16 %v583
    %v717 = vunpack.c.l.b16 %v584
    %v718 = vunpack.c.h.b16 %v584
    %v719 = vunpack.c.l.b16 %v585
    %v720 = vunpack.c.h.b16 %v585
    %v721 = vunpack.c.l.b16 %v586
    %v722 = vunpack.c.h.b16 %v586
    %v723 = vunpack.c.l.b16 %v587
    %v724 = vunpack.c.h.b16 %v587
    %v725 = vunpack.c.l.b16 %v588
    %v726 = vunpack.c.h.b16 %v588
    %v727 = vunpack.c.l.b16 %v589
    %v728 = vunpack.c.h.b16 %v589
    %v729 = vunpack.c.l.b16 %v590
    %v730 = vunpack.c.h.b16 %v590
    %v731 = vunpack.c.l.b16 %v591
    %v732 = vunpack.c.h.b16 %v591
    %v733 = vunpack.c.l.b16 %v592
    %v734 = vunpack.c.h.b16 %v592
    %v735 = vunpack.c.l.b16 %v593
    %v736 = vunpack.c.h.b16 %v593
    %v737 = vunpack.c.l.b16 %v594
    %v738 = vunpack.c.h.b16 %v594
    %v739 = vunpack.c.l.b16 %v595
    %v740 = vunpack.c.h.b16 %v595
    %v741 = vunpack.c.l.b16 %v596
    %v742 = vunpack.c.h.b16 %v596
    %v743 = vunpack.c.l.b16 %v597
    %v744 = vunpack.c.h.b16 %v597
    %v745 = vunpack.c.l.b16 %v598
    %v746 = vunpack.c.h.b16 %v598
    %v747 = vunpack.c.l.b16 %v599
    %v748 = vunpack.c.h.b16 %v599
    %v749 = vunpack.c.l.b16 %v600
    %v750 = vunpack.c.h.b16 %v600
    %v751 = vunpack.c.l.b16 %v601
    %v752 = vunpack.c.h.b16 %v601
    %v753 = vunpack.c.l.b16 %v602
    %v754 = vunpack.c.h.b16 %v602
    %v755 = vunpack.c.l.b16 %v603
    %v756 = vunpack.c.h.b16 %v603
    %v757 = vunpack.c.l.b16 %v604
    %v758 = vunpack.c.h.b16 %v604
    %v759 = vunpack.c.l.b16 %v605
    %v760 = vunpack.c.h.b16 %v605
    %v761 = vunpack.c.l.b16 %v606
    %v762 = vunpack.c.h.b16 %v606
    %v763 = vpack.c.b16 %v669, %v667
    %v764 = vpack.c.b16 %v670, %v668
    %v765 = vpack.c.b16 %v673, %v671
    %v766 = vpack.c.b16 %v674, %v672
    %v767 = vpack.c.b16 %v677, %v675
    %v768 = vpack.c.b16 %v678, %v676
    %v769 = vpack.c.b16 %v681, %v679
    %v770 = vpack.c.b16 %v682, %v680
    %v771 = vpack.c.b16 %v685, %v683
    %v772 = vpack.c.b16 %v686, %v684
    %v773 = vpack.c.b16 %v689, %v687
    %v774 = vpack.c.b16 %v690, %v688
    %v775 = vpack.c.b16 %v693, %v691
    %v776 = vpack.c.b16 %v694, %v692
    %v777 = vpack.c.b16 %v697, %v695
    %v778 = vpack.c.b16 %v698, %v696
    %v779 = vpack.c.b16 %v701, %v699
    %v780 = vpack.c.b16 %v702, %v700
    %v781 = vpack.c.b16 %v705, %v703
    %v782 = vpack.c.b16 %v706, %v704
    %v783 = vpack.c.b16 %v709, %v707
    %v784 = vpack.c.b16 %v710, %v708
    %v785 = vpack.c.b16 %v713, %v711
    %v786 = vpack.c.b16 %v714, %v712
    %v787 = vpack.c.b16 %v717, %v715
    %v788 = vpack.c.b16 %v718, %v716
    %v789 = vpack.c.b16 %v721, %v719
    %v790 = vpack.c.b16 %v722, %v720
    %v791 = vpack.c.b16 %v725, %v723
    %v792 = vpack.c.b16 %v726, %v724
    %v793 = vpack.c.b16 %v729, %v727
    %v794 = vpack.c.b16 %v730, %v728
    %v795 = vpack.c.b16 %v733, %v731
    %v796 = vpack.c.b16 %v734, %v732
    %v797 = vpack.c.b16 %v737, %v735
    %v798 = vpack.c.b16 %v738, %v736
    %v799 = vpack.c.b16 %v741, %v739
    %v800 = vpack.c.b16 %v742, %v740
    %v801 = vpack.c.b16 %v745, %v743
    %v802 = vpack.c.b16 %v746, %v744
    %v803 = vpack.c.b16 %v749, %v747
    %v804 = vpack.c.b16 %v750, %v748
    %v805 = vpack.c.b16 %v753, %v751
    %v806 = vpack.c.b16 %v754, %v752
    %v807 = vpack.c.b16 %v757, %v755
    %v808 = vpack.c.b16 %v758, %v756
    %v809 = vpack.c.b16 %v761, %v759
    %v810 = vpack.c.b16 %v762, %v760
    %859 = vmatprep.subr.bf16.mxu0 %v764
    %860 = vmatpush1.bf16.msra.mxu0 %v763
    %861 = vmatprep.subr.bf16.mxu0 %v766
    %862 = vmatpush1.bf16.msra.mxu0 %v765
    %863 = vmatprep.subr.bf16.mxu0 %v768
    %864 = vmatpush1.bf16.msra.mxu0 %v767
    %865 = vmatprep.subr.bf16.mxu0 %v770
    %866 = vmatpush1.bf16.msra.mxu0 %v769
    %867 = vmatprep.subr.bf16.mxu0 %v772
    %868 = vmatpush1.bf16.msra.mxu0 %v771
    %869 = vmatprep.subr.bf16.mxu0 %v774
    %870 = vmatpush1.bf16.msra.mxu0 %v773
    %871 = vmatprep.subr.bf16.mxu0 %v776
    %872 = vmatpush1.bf16.msra.mxu0 %v775
    %873 = vmatprep.subr.bf16.mxu0 %v778
    %874 = vmatpush1.bf16.msra.mxu0 %v777
    %875 = vmatprep.subr.bf16.mxu0 %v780
    %876 = vmatpush1.bf16.msra.mxu0 %v779
    %877 = vmatprep.subr.bf16.mxu0 %v782
    %878 = vmatpush1.bf16.msra.mxu0 %v781
    %879 = vmatprep.subr.bf16.mxu0 %v784
    %880 = vmatpush1.bf16.msra.mxu0 %v783
    %881 = vmatprep.subr.bf16.mxu0 %v786
    %882 = vmatpush1.bf16.msra.mxu0 %v785
    %883 = vmatprep.subr.bf16.mxu0 %v788
    %884 = vmatpush1.bf16.msra.mxu0 %v787
    %885 = vmatprep.subr.bf16.mxu0 %v790
    %886 = vmatpush1.bf16.msra.mxu0 %v789
    %887 = vmatprep.subr.bf16.mxu0 %v792
    %888 = vmatpush1.bf16.msra.mxu0 %v791
    %889 = vmatprep.subr.bf16.mxu0 %v794
    %890 = vmatpush1.bf16.msra.mxu0 %v793
    %891 = vmatprep.mubr.bf16.mxu0 %v557
    %892 = vmatmul.mubr.bf16.gmra.mrb[0].mxu0 %v556
    %v893 = vpop.f32.mrb[0].mxu0
    %v894 = vadd.f32 %v612, %v893
    %v895 = vpop.f32.mrb[0].mxu0
    %v896 = vadd.f32 %v616, %v895
    %v897 = vpop.f32.mrb[0].mxu0
    %v898 = vadd.f32 %v612, %v897
    %v899 = vpop.f32.mrb[0].mxu0
    %v900 = vadd.f32 %v616, %v899
    %901 = vdwg.mxu0
    %902 = vmatprep.subr.bf16.mxu0 %v796
    %903 = vmatpush1.bf16.msra.mxu0 %v795
    %904 = vmatprep.subr.bf16.mxu0 %v798
    %905 = vmatpush1.bf16.msra.mxu0 %v797
    %906 = vmatprep.subr.bf16.mxu0 %v800
    %907 = vmatpush1.bf16.msra.mxu0 %v799
    %908 = vmatprep.subr.bf16.mxu0 %v802
    %909 = vmatpush1.bf16.msra.mxu0 %v801
    %910 = vmatprep.subr.bf16.mxu0 %v804
    %911 = vmatpush1.bf16.msra.mxu0 %v803
    %912 = vmatprep.subr.bf16.mxu0 %v806
    %913 = vmatpush1.bf16.msra.mxu0 %v805
    %914 = vmatprep.subr.bf16.mxu0 %v808
    %915 = vmatpush1.bf16.msra.mxu0 %v807
    %916 = vmatprep.subr.bf16.mxu0 %v810
    %917 = vmatpush1.bf16.msra.mxu0 %v809
    %918 = vmatprep.subr.bf16.mxu0 0
    %919 = vmatpush1.bf16.msra.mxu0 0
    %920 = vmatprep.subr.bf16.mxu0 0
    %921 = vmatpush1.bf16.msra.mxu0 0
    %922 = vmatprep.subr.bf16.mxu0 0
    %923 = vmatpush1.bf16.msra.mxu0 0
    %924 = vmatprep.subr.bf16.mxu0 0
    %925 = vmatpush1.bf16.msra.mxu0 0
    %926 = vmatprep.subr.bf16.mxu0 0
    %927 = vmatpush1.bf16.msra.mxu0 0
    %928 = vmatprep.subr.bf16.mxu0 0
    %929 = vmatpush1.bf16.msra.mxu0 0
    %930 = vmatprep.subr.bf16.mxu0 0
    %931 = vmatpush1.bf16.msra.mxu0 0
    %932 = vmatprep.subr.bf16.mxu0 0
    %933 = vmatpush1.bf16.msra.mxu0 0
    %934 = vmatprep.mubr.bf16.mxu0 0
    %935 = vmatmul.mubr.bf16.gmra.mrb[0].mxu0 %v558
    %v936 = vpop.f32.mrb[0].mxu0
    %v937 = vadd.f32 %v894, %v936
    %v938 = vpop.f32.mrb[0].mxu0
    %v939 = vadd.f32 %v896, %v938
    %v940 = vpop.f32.mrb[0].mxu0
    %v941 = vadd.f32 %v898, %v940
    %v942 = vpop.f32.mrb[0].mxu0
    %v943 = vadd.f32 %v900, %v942
    %944 = vdwg.mxu0
    %v945 = vlaneseq
    %v946 = vand.u32 %v945, 127
    %v947 = vadd.s32 %v946, 128
    %vm948 = vcmp.eq.s32.totalorder %v946, 16
    %vm949 = vcmp.eq.s32.totalorder %v947, 16
    %v950 = vsub.f32 0.0, %v937
    %v951 = vsub.f32 0.0, %v939
    %v952 = vsub.f32 0.0, %v941
    %v953 = vsub.f32 0.0, %v943
    %v954 = vmul.f32 %v950, 1.442695
    %v955 = vpow.pop %v954
    %v956 = vmul.f32 %v951, 1.442695
    %v957 = vpow.pop %v956
    %v958 = vmul.f32 %v952, 1.442695
    %v959 = vpow.pop %v958
    %v960 = vmul.f32 %v953, 1.442695
    %v961 = vpow.pop %v960
    %v962 = vadd.f32 %v955, 1.0
    %v963 = vadd.f32 %v957, 1.0
    %v964 = vadd.f32 %v959, 1.0
    %v965 = vadd.f32 %v961, 1.0
    %v966 = vrcp.pop %v962
    %v967 = vrcp.pop %v963
    %v968 = vrcp.pop %v964
    %v969 = vrcp.pop %v965
    %vm970 = vcmp.ge.s32.totalorder %v946, 128
    %vm971 = vcmp.ge.s32.totalorder %v947, 128
    %v972 = vmax.f32 %v937, 0.0
    %v973 = vmax.f32 %v939, 0.0
    %v974 = vmax.f32 %v941, 0.0
    %v975 = vmax.f32 %v943, 0.0
    %v976 = vsel %vm970, %v972, %v937
    %v977 = vsel %vm971, %v973, %v939
    %v978 = vsel %vm970, %v974, %v941
    %v979 = vsel %vm971, %v975, %v943
    %v980 = vsel %vm948, %v966, %v976
    %v981 = vsel %vm949, %v967, %v977
    %v982 = vsel %vm948, %v968, %v978
    %v983 = vsel %vm949, %v969, %v979
    %v984 = vpack.c.bf16 %v982, %v980
    %v985 = vpack.c.bf16 %v983, %v981
    %v986 = vld [vmem:[%s9] sm:$0xf]
    %v987 = vld [vmem:[%s9 + $0x4] sm:$0xf]
    %v988 = vld [vmem:[%s9 + $0x8] sm:$0xf]
    %v989 = vld [vmem:[%s9 + $0xc] sm:$0xf]
    %v990 = vld [vmem:[%s9 + $0x10] sm:$0xf]
    %v991 = vld [vmem:[%s9 + $0x14] sm:$0xf]
    %v992 = vld [vmem:[%s9 + $0x18] sm:$0xf]
    %v993 = vld [vmem:[%s9 + $0x1c] sm:$0xf]
    %v994 = vld [vmem:[%s9 + $0x20] sm:$0xf]
    %v995 = vld [vmem:[%s9 + $0x24] sm:$0xf]
    %v996 = vld [vmem:[%s9 + $0x28] sm:$0xf]
    %v997 = vld [vmem:[%s9 + $0x2c] sm:$0xf]
    %v998 = vld [vmem:[%s9 + $0x30] sm:$0xf]
    %v999 = vld [vmem:[%s9 + $0x34] sm:$0xf]
    %v1000 = vld [vmem:[%s9 + $0x38] sm:$0xf]
    %v1001 = vld [vmem:[%s9 + $0x3c] sm:$0xf]
    %v1002 = vld [vmem:[%s9 + $0x40] sm:$0xf]
    %v1003 = vld [vmem:[%s9 + $0x44] sm:$0xf]
    %v1004 = vld [vmem:[%s9 + $0x48] sm:$0xf]
    %v1005 = vld [vmem:[%s9 + $0x4c] sm:$0xf]
    %v1006 = vld [vmem:[%s9 + $0x50] sm:$0xf]
    %v1007 = vld [vmem:[%s9 + $0x54] sm:$0xf]
    %v1008 = vld [vmem:[%s9 + $0x58] sm:$0xf]
    %v1009 = vld [vmem:[%s9 + $0x5c] sm:$0xf]
    %v1010 = vld [vmem:[%s9 + $0x60] sm:$0xf]
    %v1011 = vld [vmem:[%s9 + $0x64] sm:$0xf]
    %v1012 = vld [vmem:[%s9 + $0x68] sm:$0xf]
    %v1013 = vld [vmem:[%s9 + $0x6c] sm:$0xf]
    %v1014 = vld [vmem:[%s9 + $0x70] sm:$0xf]
    %v1015 = vld [vmem:[%s9 + $0x74] sm:$0xf]
    %v1016 = vld [vmem:[%s9 + $0x78] sm:$0xf]
    %v1017 = vld [vmem:[%s9 + $0x7c] sm:$0xf]
    %v1018 = vld [vmem:[#allocation2] sm:$0x1]
    %v1020 = vlaneseq
    %v1021 = vshrl.u32 %v1020, 7
    %v1022 = vsub.s32 0, %v1021
    %v1023 = vrot.slane %v1018, %v1022
    %v1057 = vunpack.c.l.b16 %v986
    %v1058 = vunpack.c.l.b16 %v987
    %v1059 = vunpack.c.l.b16 %v988
    %v1060 = vunpack.c.l.b16 %v989
    %v1061 = vunpack.c.l.b16 %v990
    %v1062 = vunpack.c.l.b16 %v991
    %v1063 = vunpack.c.l.b16 %v992
    %v1064 = vunpack.c.l.b16 %v993
    %v1065 = vunpack.c.l.b16 %v994
    %v1066 = vunpack.c.l.b16 %v995
    %v1067 = vunpack.c.l.b16 %v996
    %v1068 = vunpack.c.l.b16 %v997
    %v1069 = vunpack.c.l.b16 %v998
    %v1070 = vunpack.c.l.b16 %v999
    %v1071 = vunpack.c.l.b16 %v1000
    %v1072 = vunpack.c.l.b16 %v1001
    %v1073 = vunpack.c.l.b16 %v1002
    %v1074 = vunpack.c.l.b16 %v1003
    %v1075 = vunpack.c.l.b16 %v1004
    %v1076 = vunpack.c.l.b16 %v1005
    %v1077 = vunpack.c.l.b16 %v1006
    %v1078 = vunpack.c.l.b16 %v1007
    %v1079 = vunpack.c.l.b16 %v1008
    %v1080 = vunpack.c.l.b16 %v1009
    %v1081 = vunpack.c.l.b16 %v1010
    %v1082 = vunpack.c.l.b16 %v1011
    %v1083 = vunpack.c.l.b16 %v1012
    %v1084 = vunpack.c.l.b16 %v1013
    %v1085 = vunpack.c.l.b16 %v1014
    %v1086 = vunpack.c.l.b16 %v1015
    %v1087 = vunpack.c.l.b16 %v1016
    %v1088 = vunpack.c.l.b16 %v1017
    %v1089 = vpack.c.b16 %v1058, %v1057
    %v1090 = vpack.c.b16 %v1060, %v1059
    %v1091 = vpack.c.b16 %v1062, %v1061
    %v1092 = vpack.c.b16 %v1064, %v1063
    %v1093 = vpack.c.b16 %v1066, %v1065
    %v1094 = vpack.c.b16 %v1068, %v1067
    %v1095 = vpack.c.b16 %v1070, %v1069
    %v1096 = vpack.c.b16 %v1072, %v1071
    %v1097 = vpack.c.b16 %v1074, %v1073
    %v1098 = vpack.c.b16 %v1076, %v1075
    %v1099 = vpack.c.b16 %v1078, %v1077
    %v1100 = vpack.c.b16 %v1080, %v1079
    %v1101 = vpack.c.b16 %v1082, %v1081
    %v1102 = vpack.c.b16 %v1084, %v1083
    %v1103 = vpack.c.b16 %v1086, %v1085
    %v1104 = vpack.c.b16 %v1088, %v1087
    %1121 = vmatprep.subr.bf16.mxu0 0
    %1122 = vmatpush1.bf16.msra.mxu0 %v1089
    %1123 = vmatprep.subr.bf16.mxu0 0
    %1124 = vmatpush1.bf16.msra.mxu0 %v1090
    %1125 = vmatprep.subr.bf16.mxu0 0
    %1126 = vmatpush1.bf16.msra.mxu0 %v1091
    %1127 = vmatprep.subr.bf16.mxu0 0
    %1128 = vmatpush1.bf16.msra.mxu0 %v1092
    %1129 = vmatprep.subr.bf16.mxu0 0
    %1130 = vmatpush1.bf16.msra.mxu0 %v1093
    %1131 = vmatprep.subr.bf16.mxu0 0
    %1132 = vmatpush1.bf16.msra.mxu0 %v1094
    %1133 = vmatprep.subr.bf16.mxu0 0
    %1134 = vmatpush1.bf16.msra.mxu0 %v1095
    %1135 = vmatprep.subr.bf16.mxu0 0
    %1136 = vmatpush1.bf16.msra.mxu0 %v1096
    %1137 = vmatprep.subr.bf16.mxu0 0
    %1138 = vmatpush1.bf16.msra.mxu0 %v1097
    %1139 = vmatprep.subr.bf16.mxu0 0
    %1140 = vmatpush1.bf16.msra.mxu0 %v1098
    %1141 = vmatprep.subr.bf16.mxu0 0
    %1142 = vmatpush1.bf16.msra.mxu0 %v1099
    %1143 = vmatprep.subr.bf16.mxu0 0
    %1144 = vmatpush1.bf16.msra.mxu0 %v1100
    %1145 = vmatprep.subr.bf16.mxu0 0
    %1146 = vmatpush1.bf16.msra.mxu0 %v1101
    %1147 = vmatprep.subr.bf16.mxu0 0
    %1148 = vmatpush1.bf16.msra.mxu0 %v1102
    %1149 = vmatprep.subr.bf16.mxu0 0
    %1150 = vmatpush1.bf16.msra.mxu0 %v1103
    %1151 = vmatprep.subr.bf16.mxu0 0
    %1152 = vmatpush1.bf16.msra.mxu0 %v1104
    %1153 = vmatprep.mubr.bf16.mxu0 %v985
    %1154 = vmatmul.mubr.bf16.gmra.mrb[0].mxu0 %v984
    %v1155 = vpop.f32.mrb[0].mxu0
    %v1156 = vadd.f32 %v1023, %v1155
    %v1157 = vpop.f32.mrb[0].mxu0
    %v1158 = vpop.f32.mrb[0].mxu0
    %v1159 = vadd.f32 %v1023, %v1158
    %v1160 = vpop.f32.mrb[0].mxu0
    %1161 = vdwg.mxu0
    %v1162 = vsub.f32 0.0, %v1156
    %v1163 = vsub.f32 0.0, %v1159
    %v1164 = vmul.f32 %v1162, 1.442695
    %v1165 = vpow.pop %v1164
    %v1166 = vmul.f32 %v1163, 1.442695
    %v1167 = vpow.pop %v1166
    %v1168 = vadd.f32 %v1165, 1.0
    %v1169 = vadd.f32 %v1167, 1.0
    %v1170 = vrcp.pop %v1168
    %v1171 = vrcp.pop %v1169
    %1172 = vst.msk [vmem:[#allocation6] sm:$0xff] %vm462, %v358
    %1173 = vst.msk [vmem:[#allocation6 + $0x8] sm:$0xff] %vm462, %v361
    %1176 = vrot.lane.b32.xlu0 %v980, 64
    %v1177 = vpop.permute.xlu0 %1176
    %1178 = vrot.lane.b32.xlu0 %v982, 64
    %v1179 = vpop.permute.xlu0 %1178
    %vm1182 = vcmask 1048064
    %1183 = vst.msk [vmem:[#allocation6] sm:$0xff] %vm1182, %v1177
    %1184 = vst.msk [vmem:[#allocation6 + $0x8] sm:$0xff] %vm1182, %v1179
    %1187 = vrot.lane.b32.xlu0 %v1170, 81
    %v1188 = vpop.permute.xlu0 %1187
    %1189 = vrot.lane.b32.xlu0 %v1171, 81
    %v1190 = vpop.permute.xlu0 %1189
    %vm1193 = vcmask 671368
    %1194 = vst.msk [vmem:[#allocation6] sm:$0xff] %vm1193, %v1188
    %1195 = vst.msk [vmem:[#allocation6 + $0x8] sm:$0xff] %vm1193, %v1190
    // Predicated region
    $region50: #{tpu_custom_call.1} parent=1 // pred_check
      _
    $region51: #{tpu_custom_call.1} parent=1 // pred_check_branch
      %1197 = sbr.rel (0) target = $region53
    $region52: #{tpu_custom_call.1} parent=1 // pred_region
      %s1199 = ssub.s32 256, 256
      %1200 = vsyncadd [#allocation5], %s1199
      %s1201 = sshll.u32 [#allocation6], 4
      %s1202 = int_to_ptr.vmem [resolvable:$true] %s1201
      %1207 = dma.vmem_to_hbm [thread:$0]  %s1202, 256, %s11, [#allocation5], 128, 128, 8
    $region53: #{tpu_custom_call.1} parent=1 // pred_fallthru
      _
    // Predicated region
    $region54: #{tpu_custom_call.1} parent=1 // pred_check
      _
    $region55: #{tpu_custom_call.1} parent=1 // pred_check_branch
      %1209 = sbr.rel (0) target = $region57
    $region56: #{tpu_custom_call.1} parent=1 // pred_region
      %1210 = dma.done [#allocation5], 256
    $region57: #{tpu_custom_call.1} parent=1 // pred_fallthru
      _
    %1211 = vsyncpa [#allocation4], 1
    %1212 = vsyncpa [#allocation5], 1

</llo_original>
